<compile_context>
chip_gen: v7x
topology: tpu7x:2x2x1
jax: 0.10.0
libtpu: 0.0.40
codegen_flags: <defaults>
</compile_context>

<pallas_src>
import functools

import jax
import jax.numpy as jnp
from jax import lax
from jax.experimental import pallas as pl
from jax.experimental.pallas import tpu as pltpu


def _round_up(x, m):
    return (x + m - 1) // m * m


def _is_multi_tensorcore():
    """True on chips with 2 TensorCores sharing the grid (v4/v5p/v7x megacore)."""
    try:
        kind = jax.devices()[0].device_kind.lower()
    except Exception:
        return False
    return any(tag in kind for tag in ("v7", "v5p", "v4"))


def _pick_row_tile(M, row_align, tm_max, prefer_even_steps):
    """Pick a row-tile size: a multiple of row_align, <= tm_max, ideally an
    exact divisor of M (no HBM pad / slice copies), and — on 2-TC chips — the
    largest such divisor that also gives an EVEN grid-step count so both
    TensorCores receive equal work."""
    tm_max = max(row_align, (tm_max // row_align) * row_align)
    if M % row_align == 0:
        best = None
        for j in range(min(tm_max, M) // row_align, 0, -1):
            d = j * row_align
            if M % d == 0:
                if best is None:
                    best = d
                    if not prefer_even_steps:
                        break
                if (M // d) % 2 == 0:
                    return d            # largest aligned divisor with even steps
        if best is not None:
            return best
    # Ragged M (rare; M = B*Ho*Wo is usually 8*row_pack aligned): pad path.
    return min(tm_max, _round_up(M, row_align))


def _patch_embed_kernel_grouped(p_ref, w_ref, b_ref, g_ref, beta_ref, avg_ref,
                                o_ref, *, eps):
    # p_ref: (tm_g, row_pack*K) packed im2col rows
    # w_ref: (row_pack*K, row_pack*D) block-diagonal GEMM weight
    # b/g/beta: (1, row_pack*D) tiled conv-bias / LN gamma / LN beta
    # avg_ref: (row_pack*D, row_pack*D) block-diag averaging matrix (1/D blocks)
    y = jnp.dot(p_ref[...], w_ref[...], preferred_element_type=jnp.float32)
    y = y + b_ref[...]
    # Per-token (per D-lane group) LayerNorm stats via block-diag averaging
    # matmuls: stays lane-dense, no XLU shuffles, all stats in f32.
    mean = jnp.dot(y, avg_ref[...], preferred_element_type=jnp.float32)
    cent = y - mean
    var = jnp.dot(cent * cent, avg_ref[...], preferred_element_type=jnp.float32)
    yn = cent * lax.rsqrt(var + eps)
    o_ref[...] = (yn * g_ref[...] + beta_ref[...]).astype(o_ref.dtype)


def _patch_embed_kernel_plain(p_ref, w_ref, b_ref, g_ref, beta_ref, o_ref, *, eps):
    # Used when embed_dim does not need row packing (e.g. already >=128 lanes).
    y = jnp.dot(p_ref[...], w_ref[...], preferred_element_type=jnp.float32)
    y = y + b_ref[...]
    mean = jnp.mean(y, axis=-1, keepdims=True)
    cent = y - mean
    var = jnp.mean(cent * cent, axis=-1, keepdims=True)
    yn = cent * lax.rsqrt(var + eps)
    o_ref[...] = (yn * g_ref[...] + beta_ref[...]).astype(o_ref.dtype)


def patch_embed(x, w, b, gamma, beta, *, patch_size, kernel_size, eps=1e-5,
                tm=8192, compute_dtype=None, out_dtype=None, multi_core=None):
    """Forward of PatchEmbed (overlap=True): conv -> flatten -> transpose -> LayerNorm.

    compute_dtype: dtype of the GEMM operands (im2col patches & weight).
      bf16 is recommended on v5e, v6e and v7x — the kernel is HBM-bandwidth
      bound and bf16 halves the dominant patch stream; accumulation and all
      LayerNorm math stay f32 in-kernel regardless (v5e VPU/EUP safe).
    out_dtype: dtype of the embedding output (bf16 trims output HBM bytes if
      the downstream consumer accepts it). Defaults to x.dtype.
    multi_core: force/disable the even-grid-step preference for 2-TC chips;
      auto-detected from the device kind when None.
    """
    B, C, H, W = x.shape
    D = w.shape[0]
    s, k = patch_size, kernel_size
    pad = k // 2
    Ho, Wo = H // s, W // s
    N = Ho * Wo
    K = C * k * k
    M = B * N
    if compute_dtype is None:
        compute_dtype = x.dtype
    if out_dtype is None:
        out_dtype = x.dtype
    if multi_core is None:
        multi_core = _is_multi_tensorcore()

    # Pack `row_pack` tokens per 128-lane output slab (unmasked full-lane vst).
    if D < 128 and 128 % D == 0:
        row_pack = 128 // D
    else:
        # NOTE: D < 128 with 128 % D != 0 falls back to masked (<128-lane) stores.
        row_pack = 1
    Dg = row_pack * D
    Kg = row_pack * K

    # ---- im2col with K trailing, built directly in compute_dtype ----
    # TODO(synk): fuse im2col into the kernel (manual strided DMAs from padded
    # NHWC x via memory_space=pl.ANY) to remove the wrapper-side (M,K) HBM
    # round-trip — the remaining dominant HBM cost for large shapes.
    x_nhwc = jnp.transpose(x.astype(compute_dtype), (0, 2, 3, 1))   # (B,H,W,C)
    x_pad = jnp.pad(x_nhwc, ((0, 0), (pad, pad), (pad, pad), (0, 0)))
    cols = []
    for ki in range(k):
        for kj in range(k):
            cols.append(x_pad[:, ki:ki + Ho * s:s, kj:kj + Wo * s:s, :])  # (B,Ho,Wo,C)
    patches = jnp.concatenate(cols, axis=-1).reshape(M, K)          # K order: (ki,kj,c)

    # Conv weight (D,C,kh,kw) -> (K,D) with matching (ki,kj,c) flatten order.
    w_mat = jnp.transpose(w, (0, 2, 3, 1)).reshape(D, K).T.astype(jnp.float32)

    # ---- tiling: large aligned tiles, divisor-of-M when possible, even steps on 2-TC ----
    row_align = 8 * row_pack
    tm_eff = _pick_row_tile(M, row_align, tm, prefer_even_steps=multi_core)
    M_pad = _round_up(M, tm_eff)
    grid = (M_pad // tm_eff,)
    tm_g = tm_eff // row_pack

    if M_pad != M:
        # Padded rows emit rsqrt(eps)-scale junk through LayerNorm and are
        # sliced off below; only reached when M is not 8*row_pack aligned.
        patches = jnp.pad(patches, ((0, M_pad - M), (0, 0)))
    patches_packed = patches.reshape(M_pad // row_pack, Kg)

    eye = jnp.eye(row_pack, dtype=jnp.float32)
    w_blk = jnp.kron(eye, w_mat).astype(compute_dtype)               # (Kg, Dg) block-diag
    b_row = jnp.tile(b.astype(jnp.float32), row_pack)[None, :]
    g_row = jnp.tile(gamma.astype(jnp.float32), row_pack)[None, :]
    beta_row = jnp.tile(beta.astype(jnp.float32), row_pack)[None, :]

    in_specs = [
        pl.BlockSpec((tm_g, Kg), lambda i: (i, 0)),   # packed patch tile
        pl.BlockSpec((Kg, Dg), lambda i: (0, 0)),     # block-diag weight (resident)
        pl.BlockSpec((1, Dg), lambda i: (0, 0)),      # conv bias
        pl.BlockSpec((1, Dg), lambda i: (0, 0)),      # LN gamma
        pl.BlockSpec((1, Dg), lambda i: (0, 0)),      # LN beta
    ]
    args = [patches_packed, w_blk, b_row, g_row, beta_row]
    if row_pack > 1:
        avg = jnp.kron(eye, jnp.full((D, D), 1.0 / D, dtype=jnp.float32))
        in_specs.append(pl.BlockSpec((Dg, Dg), lambda i: (0, 0)))    # LN averaging (resident)
        args.append(avg)
        kernel = functools.partial(_patch_embed_kernel_grouped, eps=eps)
    else:
        kernel = functools.partial(_patch_embed_kernel_plain, eps=eps)

    # Right-size the scoped VMEM limit from the actual (double-buffered) footprint.
    in_isz = jnp.dtype(compute_dtype).itemsize
    out_isz = jnp.dtype(out_dtype).itemsize
    tile_bytes = tm_g * Kg * in_isz + tm_g * Dg * out_isz
    resident_bytes = (Kg * Dg * in_isz + 3 * Dg * 4
                      + (Dg * Dg * 4 if row_pack > 1 else 0))
    vmem_limit = 2 * (tile_bytes + resident_bytes) + (8 << 20)       # + compiler headroom
    vmem_limit = int(min(max(vmem_limit, 16 << 20), 64 << 20))

    out_packed = pl.pallas_call(
        kernel,
        out_shape=jax.ShapeDtypeStruct((M_pad // row_pack, Dg), out_dtype),
        grid_spec=pltpu.PrefetchScalarGridSpec(
            num_scalar_prefetch=0,
            grid=grid,
            in_specs=in_specs,
            out_specs=pl.BlockSpec((tm_g, Dg), lambda i: (i, 0)),
        ),
        compiler_params=pltpu.CompilerParams(
            dimension_semantics=("parallel",),
            vmem_limit_bytes=vmem_limit),
    )(*args)

    # Free row-major reshapes; slice only if padding was actually added.
    out = out_packed.reshape(M_pad, D)
    if M_pad != M:
        out = out[:M]
    return out.reshape(B, N, D), (Ho, Wo)


def _reference(x, w, b, gamma, beta, *, patch_size, kernel_size, eps=1e-5):
    """Pure-JAX reference (conv + LayerNorm) mirroring the PyTorch forward."""
    B, C, H, W = x.shape
    D = w.shape[0]
    s, k = patch_size, kernel_size
    pad = k // 2
    y = lax.conv_general_dilated(
        x, w, window_strides=(s, s), padding=((pad, pad), (pad, pad)),
        dimension_numbers=("NCHW", "OIHW", "NCHW"))
    y = y + b[None, :, None, None]
    Ho, Wo = y.shape[2], y.shape[3]
    y = y.reshape(B, D, Ho * Wo).transpose(0, 2, 1)   # (B, N, D)
    mean = jnp.mean(y, axis=-1, keepdims=True)
    var = jnp.mean((y - mean) ** 2, axis=-1, keepdims=True)
    yn = (y - mean) * lax.rsqrt(var + eps)
    return yn * gamma + beta, (Ho, Wo)


if __name__ == "__main__":
    # Small shapes consistent with the module: img=16, patch=4, kernel=3,
    # in_chans=4, embed_dim=32, batch=2, overlap=True.
    B, C, H, W = 2, 4, 16, 16
    patch_size, kernel_size, embed_dim = 4, 3, 32

    key = jax.random.PRNGKey(0)
    kx, kw, kb = jax.random.split(key, 3)
    x = jax.random.normal(kx, (B, C, H, W), dtype=jnp.float32)
    w = jax.random.normal(kw, (embed_dim, C, kernel_size, kernel_size),
                          dtype=jnp.float32) * 0.05
    b = jax.random.normal(kb, (embed_dim,), dtype=jnp.float32) * 0.05
    gamma = jnp.ones((embed_dim,), dtype=jnp.float32)   # PyTorch LayerNorm default init
    beta = jnp.zeros((embed_dim,), dtype=jnp.float32)

    ref, (Hr, Wr) = _reference(x, w, b, gamma, beta,
                               patch_size=patch_size, kernel_size=kernel_size)

    # f32 operand path (default; tight tolerance check).
    pe_f32 = jax.jit(functools.partial(
        patch_embed, patch_size=patch_size, kernel_size=kernel_size))
    out, (Ho, Wo) = pe_f32(x, w, b, gamma, beta)
    out = jax.block_until_ready(out)
    assert out.shape == (B, (H // patch_size) * (W // patch_size), embed_dim)
    assert (int(Ho), int(Wo)) == (Hr, Wr) == (H // patch_size, W // patch_size)
    assert jnp.allclose(out, ref, atol=1e-4, rtol=1e-4), "f32 mismatch vs reference"

    # bf16 operand path (recommended on v5e/v6e/v7x): halves the dominant
    # im2col DMA bytes; accumulation + LayerNorm remain f32 in-kernel.
    pe_bf16 = jax.jit(functools.partial(
        patch_embed, patch_size=patch_size, kernel_size=kernel_size,
        compute_dtype=jnp.bfloat16))
    out_bf16, _ = pe_bf16(x, w, b, gamma, beta)
    out_bf16 = jax.block_until_ready(out_bf16)
    assert jnp.allclose(out_bf16, ref, atol=7e-2, rtol=7e-2), "bf16 mismatch vs reference"

    # bf16 output path (f32 operands; exercises out_dtype plumbing).
    pe_outbf16 = jax.jit(functools.partial(
        patch_embed, patch_size=patch_size, kernel_size=kernel_size,
        out_dtype=jnp.bfloat16))
    out_o16, _ = pe_outbf16(x, w, b, gamma, beta)
    out_o16 = jax.block_until_ready(out_o16)
    assert out_o16.dtype == jnp.bfloat16
    assert jnp.allclose(out_o16.astype(jnp.float32), ref, atol=5e-2, rtol=5e-2), \
        "bf16-output mismatch vs reference"

    print("KERNEL_OK")
</pallas_src>

<mosaic_0001>
module attributes {stable_mosaic.version = 11 : i64} {
  func.func @_patch_embed_kernel_grouped(%arg0: i32, %arg1: memref<8x144xf32, #tpu.memory_space<vmem>>, %arg2: memref<144x128xf32, #tpu.memory_space<vmem>>, %arg3: memref<1x128xf32, #tpu.memory_space<vmem>>, %arg4: memref<1x128xf32, #tpu.memory_space<vmem>>, %arg5: memref<1x128xf32, #tpu.memory_space<vmem>>, %arg6: memref<128x128xf32, #tpu.memory_space<vmem>>, %arg7: memref<8x128xf32, #tpu.memory_space<vmem>>) attributes {dimension_semantics = [#tpu.dimension_semantics<parallel>], iteration_bounds = array<i64: 1>, scalar_prefetch = 0 : i64, scratch_operands = 0 : i64, tpu.core_type = #tpu.core_type<tc>, window_params = [{transform_indices = @transform_0, window_bounds = array<i64: 8, 144>}, {pipeline_mode = #tpu.pipeline_mode<synchronous>, transform_indices = @transform_1, window_bounds = array<i64: 144, 128>}, {pipeline_mode = #tpu.pipeline_mode<synchronous>, transform_indices = @transform_2, window_bounds = array<i64: 1, 128>}, {pipeline_mode = #tpu.pipeline_mode<synchronous>, transform_indices = @transform_3, window_bounds = array<i64: 1, 128>}, {pipeline_mode = #tpu.pipeline_mode<synchronous>, transform_indices = @transform_4, window_bounds = array<i64: 1, 128>}, {pipeline_mode = #tpu.pipeline_mode<synchronous>, transform_indices = @transform_5, window_bounds = array<i64: 128, 128>}, {transform_indices = @transform_6, window_bounds = array<i64: 8, 128>}]} {
    %c0 = arith.constant 0 : index
    %c0_0 = arith.constant 0 : index
    %0 = vector.load %arg1[%c0, %c0_0] : memref<8x144xf32, #tpu.memory_space<vmem>>, vector<8x144xf32>
    %c0_1 = arith.constant 0 : index
    %c0_2 = arith.constant 0 : index
    %1 = vector.load %arg2[%c0_1, %c0_2] : memref<144x128xf32, #tpu.memory_space<vmem>>, vector<144x128xf32>
    %cst = arith.constant dense<0.000000e+00> : vector<8x128xf32>
    %2 = tpu.matmul %0, %1, %cst {dimension_numbers = #tpu.dot_dimension_numbers<[1], [0], [0], [1], [0, 0, 1, 1], [], []>} : vector<8x144xf32>, vector<144x128xf32>, vector<8x128xf32> -> vector<8x128xf32>
    %c0_3 = arith.constant 0 : index
    %c0_4 = arith.constant 0 : index
    %3 = vector.load %arg3[%c0_3, %c0_4] : memref<1x128xf32, #tpu.memory_space<vmem>>, vector<1x128xf32>
    %4 = vector.broadcast %3 : vector<1x128xf32> to vector<8x128xf32>
    %5 = arith.addf %2, %4 : vector<8x128xf32>
    %c0_5 = arith.constant 0 : index
    %c0_6 = arith.constant 0 : index
    %6 = vector.load %arg6[%c0_5, %c0_6] : memref<128x128xf32, #tpu.memory_space<vmem>>, vector<128x128xf32>
    %cst_7 = arith.constant dense<0.000000e+00> : vector<8x128xf32>
    %7 = tpu.matmul %5, %6, %cst_7 {dimension_numbers = #tpu.dot_dimension_numbers<[1], [0], [0], [1], [0, 0, 1, 1], [], []>} : vector<8x128xf32>, vector<128x128xf32>, vector<8x128xf32> -> vector<8x128xf32>
    %8 = arith.subf %5, %7 : vector<8x128xf32>
    %9 = arith.mulf %8, %8 : vector<8x128xf32>
    %c0_8 = arith.constant 0 : index
    %c0_9 = arith.constant 0 : index
    %10 = vector.load %arg6[%c0_8, %c0_9] : memref<128x128xf32, #tpu.memory_space<vmem>>, vector<128x128xf32>
    %cst_10 = arith.constant dense<0.000000e+00> : vector<8x128xf32>
    %11 = tpu.matmul %9, %10, %cst_10 {dimension_numbers = #tpu.dot_dimension_numbers<[1], [0], [0], [1], [0, 0, 1, 1], [], []>} : vector<8x128xf32>, vector<128x128xf32>, vector<8x128xf32> -> vector<8x128xf32>
    %cst_11 = arith.constant 9.99999974E-6 : f32
    %12 = vector.broadcast %cst_11 : f32 to vector<8x128xf32>
    %13 = arith.addf %11, %12 : vector<8x128xf32>
    %14 = math.rsqrt %13 : vector<8x128xf32>
    %15 = arith.mulf %8, %14 : vector<8x128xf32>
    %c0_12 = arith.constant 0 : index
    %c0_13 = arith.constant 0 : index
    %16 = vector.load %arg4[%c0_12, %c0_13] : memref<1x128xf32, #tpu.memory_space<vmem>>, vector<1x128xf32>
    %17 = vector.broadcast %16 : vector<1x128xf32> to vector<8x128xf32>
    %18 = arith.mulf %15, %17 : vector<8x128xf32>
    %c0_14 = arith.constant 0 : index
    %c0_15 = arith.constant 0 : index
    %19 = vector.load %arg5[%c0_14, %c0_15] : memref<1x128xf32, #tpu.memory_space<vmem>>, vector<1x128xf32>
    %20 = vector.broadcast %19 : vector<1x128xf32> to vector<8x128xf32>
    %21 = arith.addf %18, %20 : vector<8x128xf32>
    %c0_16 = arith.constant 0 : index
    %c0_17 = arith.constant 0 : index
    %22 = vector.load %arg7[%c0_16, %c0_17] : memref<8x128xf32, #tpu.memory_space<vmem>>, vector<8x128xf32>
    tpu.vector_store %arg7[%c0_16, %c0_17], %21 {strides = array<i32>} : memref<8x128xf32, #tpu.memory_space<vmem>>, vector<8x128xf32>,
    return
  }
  func.func @transform_0(%arg0: i32) -> (i32, i32) {
    %c0_i32 = arith.constant 0 : i32
    %c0_i32_0 = arith.constant 0 : i32
    return %arg0, %c0_i32 : i32, i32
  }
  func.func @transform_1(%arg0: i32) -> (i32, i32) {
    %c0_i32 = arith.constant 0 : i32
    %c0_i32_0 = arith.constant 0 : i32
    %c0_i32_1 = arith.constant 0 : i32
    return %c0_i32, %c0_i32_0 : i32, i32
  }
  func.func @transform_2(%arg0: i32) -> (i32, i32) {
    %c0_i32 = arith.constant 0 : i32
    %c0_i32_0 = arith.constant 0 : i32
    %c0_i32_1 = arith.constant 0 : i32
    return %c0_i32, %c0_i32_0 : i32, i32
  }
  func.func @transform_3(%arg0: i32) -> (i32, i32) {
    %c0_i32 = arith.constant 0 : i32
    %c0_i32_0 = arith.constant 0 : i32
    %c0_i32_1 = arith.constant 0 : i32
    return %c0_i32, %c0_i32_0 : i32, i32
  }
  func.func @transform_4(%arg0: i32) -> (i32, i32) {
    %c0_i32 = arith.constant 0 : i32
    %c0_i32_0 = arith.constant 0 : i32
    %c0_i32_1 = arith.constant 0 : i32
    return %c0_i32, %c0_i32_0 : i32, i32
  }
  func.func @transform_5(%arg0: i32) -> (i32, i32) {
    %c0_i32 = arith.constant 0 : i32
    %c0_i32_0 = arith.constant 0 : i32
    %c0_i32_1 = arith.constant 0 : i32
    return %c0_i32, %c0_i32_0 : i32, i32
  }
  func.func @transform_6(%arg0: i32) -> (i32, i32) {
    %c0_i32 = arith.constant 0 : i32
    %c0_i32_0 = arith.constant 0 : i32
    return %arg0, %c0_i32 : i32, i32
  }
}

</mosaic_0001>

<llo_original>
// kernel: tile.18
$region0: #{tile.18}
  #allocation0 [shape = 's32[1]{0}', space=sflag, size = 0x4, scoped, tag = 'scoped memory for tile.18']
  %s0 = inlined_call_operand.vmem [shape: f32[32], index: 0, kind: input, shape index: {}]
  %s1 = inlined_call_operand.vmem [shape: f32[4,32], index: 1, kind: output, shape index: {}]
  // Predicated region
  $region2: #{tile.18} parent=0 // pred_check
    _
  $region3: #{tile.18} parent=0 // pred_check_branch
    %3 = sbr.rel (0) target = $region5
  $region4: #{tile.18} parent=0 // pred_region
    _
  $region5: #{tile.18} parent=0 // pred_fallthru
    _
  %v4 = vld [vmem:[%s0] ss:$0 sm:$0xff]
  %5 = vst [vmem:[%s1] sm:$0xf] %v4

// kernel: tile.19
$region0: #{tile.19}
  %s0 = inlined_call_operand.vmem [shape: f32[4,32], index: 0, kind: input, shape index: {}]
  %s1 = inlined_call_operand.vmem [shape: f32[1,128], index: 1, kind: output, shape index: {}]
  $region1: #{tile.19} parent=0
    #allocation0 [shape = 'u8[4096]{0}', space=vmem, size = 0x1000, scoped, tag = 'scoped mem for output reshape']
    #allocation1 [shape = 'u8[4096]{0}', space=vmem, size = 0x1000, scoped, tag = 'scoped mem for input reshape']
    %s3 = sshllo.u32 0, 4
    %v4 = vld [vmem:[%s0] sm:%s3]
    %5 = vst [vmem:[#allocation1] sm:%s3] %v4
    %v6 = vld [vmem:[#allocation1] sm:$0x1]
    %vm7 = vcmask 261120
    %8 = vst.msk [vmem:[#allocation0] sm:$0x1] %vm7, %v6
    %s9 = scalar_lea.vmem [#allocation1], 3
    %v10 = vld [vmem:[%s9] sm:$0x1]
    %11 = vrot.lane.b32.xlu0 %v10, 96
    %v12 = vpop.permute.xlu0 %11
    %vm13 = vcmask 1048320
    %14 = vst.msk [vmem:[#allocation0] sm:$0x1] %vm13, %v12
    %s15 = scalar_lea.vmem [#allocation1], 2
    %v16 = vld [vmem:[%s15] sm:$0x1]
    %17 = vrot.lane.b32.xlu0 %v16, 64
    %v18 = vpop.permute.xlu0 %17
    %vm19 = vcmask 785920
    %20 = vst.msk [vmem:[#allocation0] sm:$0x1] %vm19, %v18
    %s21 = scalar_lea.vmem [#allocation1], 1
    %v22 = vld [vmem:[%s21] sm:$0x1]
    %23 = vrot.lane.b32.xlu0 %v22, 32
    %v24 = vpop.permute.xlu0 %23
    %vm25 = vcmask 523520
    %26 = vst.msk [vmem:[#allocation0] sm:$0x1] %vm25, %v24
    %s28 = sshllo.u32 0, 1
    %v30 = vld [vmem:[#allocation0] sm:%s28]
    %s31 = sshllo.u32 0, 1
    %32 = vst [vmem:[%s1] sm:%s31] %v30

// kernel: patch_embed.1
$region0: #{patch_embed.1}
  #allocation0 [shape = 'u32[]', space=smem, size = 0x4, offset = 0x4, fixed_abs, tag = 'smem constant byte address 0x4 - core index']
  #allocation1 [shape = 'u32[144,128]{1,0:T(1,128)}', space=vmem, size = 0x12000, scoped, tag = 'internal scratch']
  %s0 = inlined_call_operand.vmem [shape: f32[8,144], index: 0, kind: input, shape index: {}]
  %s1 = inlined_call_operand.vmem [shape: f32[144,128], index: 1, kind: input, shape index: {}]
  %s2 = inlined_call_operand.vmem [shape: f32[1,128], index: 2, kind: input, shape index: {}]
  %s3 = inlined_call_operand.vmem [shape: f32[1,128], index: 3, kind: input, shape index: {}]
  %s4 = inlined_call_operand.vmem [shape: f32[1,128], index: 4, kind: input, shape index: {}]
  %s5 = inlined_call_operand.vmem [shape: f32[128,128], index: 5, kind: input, shape index: {}]
  %s6 = inlined_call_operand.vmem [shape: f32[8,128], index: 6, kind: output, shape index: {}]
  %s7 = sld [smem:[#allocation0]]
  $region34: #{patch_embed.1} parent=0
    _
  %s9 = ssub.s32 1, %s7
  %s10 = scalar_select 0, %s9, %s7
  // Predicated region
  $region2: #{patch_embed.1} parent=0 // pred_check
    _
  $region3: #{patch_embed.1} parent=0 // pred_check_branch
    %12 = sbr.rel (0) target = $region5
  $region4: #{patch_embed.1} parent=0 // pred_region
    _
  $region5: #{patch_embed.1} parent=0 // pred_fallthru
    _
  // Predicated region
  $region6: #{patch_embed.1} parent=0 // pred_check
    _
  $region7: #{patch_embed.1} parent=0 // pred_check_branch
    %14 = sbr.rel (0) target = $region9
  $region8: #{patch_embed.1} parent=0 // pred_region
    _
  $region9: #{patch_embed.1} parent=0 // pred_fallthru
    _
  // Predicated region
  $region10: #{patch_embed.1} parent=0 // pred_check
    _
  $region11: #{patch_embed.1} parent=0 // pred_check_branch
    %16 = sbr.rel (0) target = $region13
  $region12: #{patch_embed.1} parent=0 // pred_region
    _
  $region13: #{patch_embed.1} parent=0 // pred_fallthru
    _
  // Predicated region
  $region14: #{patch_embed.1} parent=0 // pred_check
    _
  $region15: #{patch_embed.1} parent=0 // pred_check_branch
    %18 = sbr.rel (0) target = $region17
  $region16: #{patch_embed.1} parent=0 // pred_region
    _
  $region17: #{patch_embed.1} parent=0 // pred_fallthru
    _
  // Predicated region
  $region18: #{patch_embed.1} parent=0 // pred_check
    _
  $region19: #{patch_embed.1} parent=0 // pred_check_branch
    %20 = sbr.rel (0) target = $region21
  $region20: #{patch_embed.1} parent=0 // pred_region
    _
  $region21: #{patch_embed.1} parent=0 // pred_fallthru
    _
  // Predicated region
  $region22: #{patch_embed.1} parent=0 // pred_check
    _
  $region23: #{patch_embed.1} parent=0 // pred_check_branch
    %22 = sbr.rel (0) target = $region25
  $region24: #{patch_embed.1} parent=0 // pred_region
    _
  $region25: #{patch_embed.1} parent=0 // pred_fallthru
    _
  %v23 = vld [vmem:[%s0] sm:$0xff]
  %v24 = vld [vmem:[%s0 + $0x8] sm:$0xff]
  %v25 = vld [vmem:[%s1] sm:$0xff]
  %v26 = vld [vmem:[%s1 + $0x8] sm:$0xff]
  %v27 = vld [vmem:[%s1 + $0x10] sm:$0xff]
  %v28 = vld [vmem:[%s1 + $0x18] sm:$0xff]
  %v29 = vld [vmem:[%s1 + $0x20] sm:$0xff]
  %v30 = vld [vmem:[%s1 + $0x28] sm:$0xff]
  %v31 = vld [vmem:[%s1 + $0x30] sm:$0xff]
  %v32 = vld [vmem:[%s1 + $0x38] sm:$0xff]
  %v33 = vld [vmem:[%s1 + $0x40] sm:$0xff]
  %v34 = vld [vmem:[%s1 + $0x48] sm:$0xff]
  %v35 = vld [vmem:[%s1 + $0x50] sm:$0xff]
  %v36 = vld [vmem:[%s1 + $0x58] sm:$0xff]
  %v37 = vld [vmem:[%s1 + $0x60] sm:$0xff]
  %v38 = vld [vmem:[%s1 + $0x68] sm:$0xff]
  %v39 = vld [vmem:[%s1 + $0x70] sm:$0xff]
  %v40 = vld [vmem:[%s1 + $0x78] sm:$0xff]
  %v41 = vld [vmem:[%s1 + $0x80] sm:$0xff]
  %v42 = vld [vmem:[%s1 + $0x88] sm:$0xff]
  %v43 = vld [vmem:[%s2] sm:$0x1]
  %v45 = vlaneseq
  %v46 = vshrl.u32 %v45, 7
  %v47 = vsub.s32 0, %v46
  %v48 = vrot.slane %v43, %v47
  %vm50 = vcmask 130048
  %v52 = vsel %vm50, %v24, 0
  %54 = vmatprep.subr.mxu0 0.0
  %55 = vmatpush1.msra.mxu0 %v25
  %56 = vmatprep.subr.mxu0 0.0
  %57 = vmatpush1.msra.mxu0 %v26
  %58 = vmatprep.subr.mxu0 0.0
  %59 = vmatpush1.msra.mxu0 %v27
  %60 = vmatprep.subr.mxu0 0.0
  %61 = vmatpush1.msra.mxu0 %v28
  %62 = vmatprep.subr.mxu0 0.0
  %63 = vmatpush1.msra.mxu0 %v29
  %64 = vmatprep.subr.mxu0 0.0
  %65 = vmatpush1.msra.mxu0 %v30
  %66 = vmatprep.subr.mxu0 0.0
  %67 = vmatpush1.msra.mxu0 %v31
  %68 = vmatprep.subr.mxu0 0.0
  %69 = vmatpush1.msra.mxu0 %v32
  %70 = vmatprep.subr.mxu0 0.0
  %71 = vmatpush1.msra.mxu0 %v33
  %72 = vmatprep.subr.mxu0 0.0
  %73 = vmatpush1.msra.mxu0 %v34
  %74 = vmatprep.subr.mxu0 0.0
  %75 = vmatpush1.msra.mxu0 %v35
  %76 = vmatprep.subr.mxu0 0.0
  %77 = vmatpush1.msra.mxu0 %v36
  %78 = vmatprep.subr.mxu0 0.0
  %79 = vmatpush1.msra.mxu0 %v37
  %80 = vmatprep.subr.mxu0 0.0
  %81 = vmatpush1.msra.mxu0 %v38
  %82 = vmatprep.subr.mxu0 0.0
  %83 = vmatpush1.msra.mxu0 %v39
  %84 = vmatprep.subr.mxu0 0.0
  %85 = vmatpush1.msra.mxu0 %v40
  %86 = vmatprep.subr.mxu0 0.0
  %87 = vmatpush1.msra.mxu0 %v41
  %88 = vmatprep.subr.mxu0 0.0
  %89 = vmatpush1.msra.mxu0 %v42
  %90 = vmatprep.subr.mxu0 0.0
  %91 = vmatpush1.msra.mxu0 0.0
  %92 = vmatprep.subr.mxu0 0.0
  %93 = vmatpush1.msra.mxu0 0.0
  %94 = vmatprep.subr.mxu0 0.0
  %95 = vmatpush1.msra.mxu0 0.0
  %96 = vmatprep.subr.mxu0 0.0
  %97 = vmatpush1.msra.mxu0 0.0
  %98 = vmatprep.subr.mxu0 0.0
  %99 = vmatpush1.msra.mxu0 0.0
  %100 = vmatprep.subr.mxu0 0.0
  %101 = vmatpush1.msra.mxu0 0.0
  %102 = vmatprep.subr.mxu0 0.0
  %103 = vmatpush1.msra.mxu0 0.0
  %104 = vmatprep.subr.mxu0 0.0
  %105 = vmatpush1.msra.mxu0 0.0
  %106 = vmatprep.subr.mxu0 0.0
  %107 = vmatpush1.msra.mxu0 0.0
  %108 = vmatprep.subr.mxu0 0.0
  %109 = vmatpush1.msra.mxu0 0.0
  %110 = vmatprep.subr.mxu0 0.0
  %111 = vmatpush1.msra.mxu0 0.0
  %112 = vmatprep.subr.mxu0 0.0
  %113 = vmatpush1.msra.mxu0 0.0
  %114 = vmatprep.subr.mxu0 0.0
  %115 = vmatpush1.msra.mxu0 0.0
  %116 = vmatprep.subr.mxu0 0.0
  %117 = vmatpush1.msra.mxu0 0.0
  %118 = vmatprep.mubr.f32.mxu0 %v52
  %119 = vmatmul.mubr.f32.gmra.mrb[0].mxu0 %v23
  %v120 = vpop.f32.mrb[0].mxu0
  %v121 = vadd.f32 %v48, %v120
  %v122 = vpop.f32.mrb[0].mxu0
  %123 = vdwg.mxu0
  %v124 = vld [vmem:[%s5] sm:$0xff]
  %v125 = vld [vmem:[%s5 + $0x8] sm:$0xff]
  %v126 = vld [vmem:[%s5 + $0x10] sm:$0xff]
  %v127 = vld [vmem:[%s5 + $0x18] sm:$0xff]
  %v128 = vld [vmem:[%s5 + $0x20] sm:$0xff]
  %v129 = vld [vmem:[%s5 + $0x28] sm:$0xff]
  %v130 = vld [vmem:[%s5 + $0x30] sm:$0xff]
  %v131 = vld [vmem:[%s5 + $0x38] sm:$0xff]
  %v132 = vld [vmem:[%s5 + $0x40] sm:$0xff]
  %v133 = vld [vmem:[%s5 + $0x48] sm:$0xff]
  %v134 = vld [vmem:[%s5 + $0x50] sm:$0xff]
  %v135 = vld [vmem:[%s5 + $0x58] sm:$0xff]
  %v136 = vld [vmem:[%s5 + $0x60] sm:$0xff]
  %v137 = vld [vmem:[%s5 + $0x68] sm:$0xff]
  %v138 = vld [vmem:[%s5 + $0x70] sm:$0xff]
  %v139 = vld [vmem:[%s5 + $0x78] sm:$0xff]
  %140 = vmatprep.subr.mxu0 0.0
  %141 = vmatpush1.msra.mxu0 %v124
  %142 = vmatprep.subr.mxu0 0.0
  %143 = vmatpush1.msra.mxu0 %v125
  %144 = vmatprep.subr.mxu0 0.0
  %145 = vmatpush1.msra.mxu0 %v126
  %146 = vmatprep.subr.mxu0 0.0
  %147 = vmatpush1.msra.mxu0 %v127
  %148 = vmatprep.subr.mxu0 0.0
  %149 = vmatpush1.msra.mxu0 %v128
  %150 = vmatprep.subr.mxu0 0.0
  %151 = vmatpush1.msra.mxu0 %v129
  %152 = vmatprep.subr.mxu0 0.0
  %153 = vmatpush1.msra.mxu0 %v130
  %154 = vmatprep.subr.mxu0 0.0
  %155 = vmatpush1.msra.mxu0 %v131
  %156 = vmatprep.subr.mxu0 0.0
  %157 = vmatpush1.msra.mxu0 %v132
  %158 = vmatprep.subr.mxu0 0.0
  %159 = vmatpush1.msra.mxu0 %v133
  %160 = vmatprep.subr.mxu0 0.0
  %161 = vmatpush1.msra.mxu0 %v134
  %162 = vmatprep.subr.mxu0 0.0
  %163 = vmatpush1.msra.mxu0 %v135
  %164 = vmatprep.subr.mxu0 0.0
  %165 = vmatpush1.msra.mxu0 %v136
  %166 = vmatprep.subr.mxu0 0.0
  %167 = vmatpush1.msra.mxu0 %v137
  %168 = vmatprep.subr.mxu0 0.0
  %169 = vmatpush1.msra.mxu0 %v138
  %170 = vmatprep.subr.mxu0 0.0
  %171 = vmatpush1.msra.mxu0 %v139
  %172 = vmatprep.subr.mxu0 0.0
  %173 = vmatpush1.msra.mxu0 0.0
  %174 = vmatprep.subr.mxu0 0.0
  %175 = vmatpush1.msra.mxu0 0.0
  %176 = vmatprep.subr.mxu0 0.0
  %177 = vmatpush1.msra.mxu0 0.0
  %178 = vmatprep.subr.mxu0 0.0
  %179 = vmatpush1.msra.mxu0 0.0
  %180 = vmatprep.subr.mxu0 0.0
  %181 = vmatpush1.msra.mxu0 0.0
  %182 = vmatprep.subr.mxu0 0.0
  %183 = vmatpush1.msra.mxu0 0.0
  %184 = vmatprep.subr.mxu0 0.0
  %185 = vmatpush1.msra.mxu0 0.0
  %186 = vmatprep.subr.mxu0 0.0
  %187 = vmatpush1.msra.mxu0 0.0
  %188 = vmatprep.subr.mxu0 0.0
  %189 = vmatpush1.msra.mxu0 0.0
  %190 = vmatprep.subr.mxu0 0.0
  %191 = vmatpush1.msra.mxu0 0.0
  %192 = vmatprep.subr.mxu0 0.0
  %193 = vmatpush1.msra.mxu0 0.0
  %194 = vmatprep.subr.mxu0 0.0
  %195 = vmatpush1.msra.mxu0 0.0
  %196 = vmatprep.subr.mxu0 0.0
  %197 = vmatpush1.msra.mxu0 0.0
  %198 = vmatprep.subr.mxu0 0.0
  %199 = vmatpush1.msra.mxu0 0.0
  %200 = vmatprep.subr.mxu0 0.0
  %201 = vmatpush1.msra.mxu0 0.0
  %202 = vmatprep.subr.mxu0 0.0
  %203 = vmatpush1.msra.mxu0 0.0
  %204 = vmatprep.mubr.f32.mxu0 0.0
  %205 = vmatmul.mubr.f32.gmra.mrb[0].mxu0 %v121
  %v206 = vpop.f32.mrb[0].mxu0
  %v207 = vadd.f32 0.0, %v206
  %v208 = vpop.f32.mrb[0].mxu0
  %209 = vdwg.mxu0
  %v210 = vsub.f32 %v121, %v207
  %v211 = vmul.f32 %v210, %v210
  %212 = vmatprep.subr.mxu0 0.0
  %213 = vmatpush1.msra.mxu0 %v124
  %214 = vmatprep.subr.mxu0 0.0
  %215 = vmatpush1.msra.mxu0 %v125
  %216 = vmatprep.subr.mxu0 0.0
  %217 = vmatpush1.msra.mxu0 %v126
  %218 = vmatprep.subr.mxu0 0.0
  %219 = vmatpush1.msra.mxu0 %v127
  %220 = vmatprep.subr.mxu0 0.0
  %221 = vmatpush1.msra.mxu0 %v128
  %222 = vmatprep.subr.mxu0 0.0
  %223 = vmatpush1.msra.mxu0 %v129
  %224 = vmatprep.subr.mxu0 0.0
  %225 = vmatpush1.msra.mxu0 %v130
  %226 = vmatprep.subr.mxu0 0.0
  %227 = vmatpush1.msra.mxu0 %v131
  %228 = vmatprep.subr.mxu0 0.0
  %229 = vmatpush1.msra.mxu0 %v132
  %230 = vmatprep.subr.mxu0 0.0
  %231 = vmatpush1.msra.mxu0 %v133
  %232 = vmatprep.subr.mxu0 0.0
  %233 = vmatpush1.msra.mxu0 %v134
  %234 = vmatprep.subr.mxu0 0.0
  %235 = vmatpush1.msra.mxu0 %v135
  %236 = vmatprep.subr.mxu0 0.0
  %237 = vmatpush1.msra.mxu0 %v136
  %238 = vmatprep.subr.mxu0 0.0
  %239 = vmatpush1.msra.mxu0 %v137
  %240 = vmatprep.subr.mxu0 0.0
  %241 = vmatpush1.msra.mxu0 %v138
  %242 = vmatprep.subr.mxu0 0.0
  %243 = vmatpush1.msra.mxu0 %v139
  %244 = vmatprep.subr.mxu0 0.0
  %245 = vmatpush1.msra.mxu0 0.0
  %246 = vmatprep.subr.mxu0 0.0
  %247 = vmatpush1.msra.mxu0 0.0
  %248 = vmatprep.subr.mxu0 0.0
  %249 = vmatpush1.msra.mxu0 0.0
  %250 = vmatprep.subr.mxu0 0.0
  %251 = vmatpush1.msra.mxu0 0.0
  %252 = vmatprep.subr.mxu0 0.0
  %253 = vmatpush1.msra.mxu0 0.0
  %254 = vmatprep.subr.mxu0 0.0
  %255 = vmatpush1.msra.mxu0 0.0
  %256 = vmatprep.subr.mxu0 0.0
  %257 = vmatpush1.msra.mxu0 0.0
  %258 = vmatprep.subr.mxu0 0.0
  %259 = vmatpush1.msra.mxu0 0.0
  %260 = vmatprep.subr.mxu0 0.0
  %261 = vmatpush1.msra.mxu0 0.0
  %262 = vmatprep.subr.mxu0 0.0
  %263 = vmatpush1.msra.mxu0 0.0
  %264 = vmatprep.subr.mxu0 0.0
  %265 = vmatpush1.msra.mxu0 0.0
  %266 = vmatprep.subr.mxu0 0.0
  %267 = vmatpush1.msra.mxu0 0.0
  %268 = vmatprep.subr.mxu0 0.0
  %269 = vmatpush1.msra.mxu0 0.0
  %270 = vmatprep.subr.mxu0 0.0
  %271 = vmatpush1.msra.mxu0 0.0
  %272 = vmatprep.subr.mxu0 0.0
  %273 = vmatpush1.msra.mxu0 0.0
  %274 = vmatprep.subr.mxu0 0.0
  %275 = vmatpush1.msra.mxu0 0.0
  %276 = vmatprep.mubr.f32.mxu0 0.0
  %277 = vmatmul.mubr.f32.gmra.mrb[0].mxu0 %v211
  %v278 = vpop.f32.mrb[0].mxu0
  %v279 = vadd.f32 1e-05, %v278
  %v280 = vpop.f32.mrb[0].mxu0
  %281 = vdwg.mxu0
  %v282 = vrsqrt.pop %v279
  %v283 = vmul.f32 %v210, %v282
  %v284 = vld [vmem:[%s3] sm:$0x1]
  %v286 = vlaneseq
  %v287 = vshrl.u32 %v286, 7
  %v288 = vsub.s32 0, %v287
  %v289 = vrot.slane %v284, %v288
  %v291 = vmul.f32 %v283, %v289
  %v292 = vld [vmem:[%s4] sm:$0x1]
  %v294 = vlaneseq
  %v295 = vshrl.u32 %v294, 7
  %v296 = vsub.s32 0, %v295
  %v297 = vrot.slane %v292, %v296
  %v299 = vadd.f32 %v291, %v297
  %300 = vst [vmem:[%s6] sm:$0xff] %v299
  // Predicated region
  $region26: #{patch_embed.1} parent=0 // pred_check
    _
  $region27: #{patch_embed.1} parent=0 // pred_check_branch
    %302 = sbr.rel (0) target = $region29
  $region28: #{patch_embed.1} parent=0 // pred_region
    _
  $region29: #{patch_embed.1} parent=0 // pred_fallthru
    _
  // Predicated region
  $region30: #{patch_embed.1} parent=0 // pred_check
    _
  $region31: #{patch_embed.1} parent=0 // pred_check_branch
    %304 = sbr.rel (0) target = $region33
  $region32: #{patch_embed.1} parent=0 // pred_region
    _
  $region33: #{patch_embed.1} parent=0 // pred_fallthru
    _

</llo_original>
